<compile_context>
chip_gen: v5e
topology: v5e:2x2
jax: 0.10.0
libtpu: 0.0.40
codegen_flags: <defaults>
</compile_context>

<pallas_src>
import jax
import jax.numpy as jnp
from jax.experimental import pallas as pl
from jax.experimental.pallas import tpu as pltpu


# --------------------------------------------------------------------------------------
# Kernel
# --------------------------------------------------------------------------------------
def _make_kernel(T, nt, needs_mask):
    """Builds the Luong-attention kernel for a (batch-tile x T-tile) grid.

    T          : full (unpadded) sequence length (static)
    nt         : number of T-tiles in the grid (static)
    needs_mask : True iff the T-tile size does not divide T (static)
    """

    def kernel(h_ref, ctx_ref, w_in_ref, b_in_ref, w_out_ref, b_out_ref,
               out_ref, wts_ref,
               gamma_sc, m_sc, l_sc, acc_sc, s_sc):
        t = pl.program_id(1)
        tT = ctx_ref.shape[1]
        H = h_ref.shape[-1]

        # ---- per-batch-tile init (first T step) ----------------------------------
        @pl.when(t == 0)
        def _():
            # gamma_h = linear_in(h) -> [tb, H], f32 accumulation on the MXU
            gamma_sc[...] = (
                jnp.dot(h_ref[...], w_in_ref[...],
                        preferred_element_type=jnp.float32)
                + b_in_ref[...].astype(jnp.float32))
            m_sc[...] = jnp.full_like(m_sc, -jnp.inf)
            l_sc[...] = jnp.zeros_like(l_sc)
            acc_sc[...] = jnp.zeros_like(acc_sc)

        ctx = ctx_ref[...]                                      # [tb, tT, H]
        gamma3 = gamma_sc[...].astype(ctx.dtype)[:, None, :]    # [tb, 1, H]

        # scores: context is the matmul LHS so each per-batch MXU call pushes tT rows
        # (same contract-over-last-dim form as flash attention's 'bqd,bkd->bqk').
        s = jnp.einsum('bth,bsh->bts', ctx, gamma3,
                       preferred_element_type=jnp.float32)[:, :, 0]   # [tb, tT] f32

        if needs_mask:
            # The last T-tile extends past T: neutralize padded columns so they cannot
            # contaminate the softmax statistics or the c_t accumulation.
            col = jax.lax.broadcasted_iota(jnp.int32, (1, tT), 1) + t * tT
            valid = col < T                                     # [1, tT]
            s = jnp.where(valid, s, -jnp.inf)
            ctx_acc = jnp.where(valid[:, :, None], ctx, jnp.zeros((), ctx.dtype))
        else:
            ctx_acc = ctx

        # Stash raw scores so the *exact* softmax weights can be emitted at the end.
        # (Leading-axis index only: no dynamic lane-offset stores.)
        if nt == 1:
            s_sc[0] = s
        else:
            s_sc[t] = s

        # ---- online softmax update ------------------------------------------------
        m_prev = m_sc[...]
        m_new = jnp.maximum(m_prev, jnp.max(s, axis=-1, keepdims=True))
        alpha = jnp.exp(m_prev - m_new)
        p = jnp.exp(s - m_new)                                  # [tb, tT] f32
        l_sc[...] = alpha * l_sc[...] + jnp.sum(p, axis=-1, keepdims=True)
        acc_sc[...] = alpha * acc_sc[...] + jnp.einsum(
            'bst,bth->bsh', p.astype(ctx.dtype)[:, None, :], ctx_acc,
            preferred_element_type=jnp.float32)[:, 0, :]        # [tb, H] f32
        m_sc[...] = m_new

        # ---- finalize (last T step) ------------------------------------------------
        @pl.when(t == nt - 1)
        def _():
            h = h_ref[...]
            # Exact normalization (plain division) for both the emitted attention
            # weights and c_t -- no approximate reciprocal in the outputs.
            inv_l = 1.0 / l_sc[...]                             # [tb, 1]
            m_fin = m_sc[...]
            tTb = s_sc.shape[-1]
            for j in range(nt):                                 # static unroll
                lo = j * tTb
                hi = min(T, lo + tTb)
                w_j = jnp.exp(s_sc[j] - m_fin) * inv_l          # [tb, tT]
                wts_ref[:, lo:hi] = w_j[:, :hi - lo].astype(wts_ref.dtype)

            c_t = (acc_sc[...] * inv_l).astype(h.dtype)         # [tb, H]
            # output = tanh(Linear(2H -> H)(cat([c_t, h], 1)))
            #        = tanh(c_t @ W_out[:H] + h @ W_out[H:] + b_out)   (static ref slices)
            out = (jnp.dot(c_t, w_out_ref[:H, :], preferred_element_type=jnp.float32)
                   + jnp.dot(h, w_out_ref[H:, :], preferred_element_type=jnp.float32)
                   + b_out_ref[...].astype(jnp.float32))
            out_ref[...] = jnp.tanh(out).astype(out_ref.dtype)

    return kernel


# --------------------------------------------------------------------------------------
# VMEM budgeting / tile selection
# --------------------------------------------------------------------------------------
def _vmem_capacity_bytes():
    """Physical per-core VMEM; conservative 64 MiB (v7x) if the query is unavailable."""
    try:
        cap = getattr(pltpu.get_tpu_info(), "vmem_capacity_bytes", None)
        if cap:
            return int(cap)
    except Exception:
        pass
    return 64 * 1024 * 1024


def _round8_down(x):
    return max(8, (x // 8) * 8)


def _choose_tiles(B, T, H, itemsize, vmem_budget, reserved_bytes):
    """Pick (tb, tT): largest double-buffered context tile that fits the VMEM budget after
    subtracting the resident parameters, accumulators and the small I/O tiles."""
    f32 = 4
    tb = min(B, 512)
    if B >= 16:
        # Keep >= 2 batch-grid steps so the "parallel" axis can shard across both
        # TensorCores on v7x (no effect on single-TC v5e/v6e).
        tb = min(tb, _round8_down(B // 2))
    if tb != B:
        tb = _round8_down(tb)
    while True:
        fixed = (reserved_bytes
                 + tb * T * f32                     # raw-score stash
                 + 2 * tb * H * f32                 # gamma + c_t accumulators
                 + 2 * tb * 128 * f32               # running max / denominator (lane-padded)
                 + 2 * 2 * tb * H * itemsize        # h input + output tile (double-buffered)
                 + 2 * tb * T * itemsize)           # attention-weights output tile
        per_row = 2 * tb * H * itemsize             # context bytes per T row (double-buffered)
        tt_max = (vmem_budget - fixed) // per_row
        if tt_max >= T:
            return tb, T
        if tt_max >= 8:
            return tb, int((tt_max // 8) * 8)
        if tb > 8:                                  # shrink the batch tile and retry
            tb = _round8_down(tb // 2)
            continue
        # Extreme shapes (parameters alone ~fill VMEM): best effort.
        return tb, min(T, 8)


# --------------------------------------------------------------------------------------
# Wrapper
# --------------------------------------------------------------------------------------
def luong_attention_forward(h, context, w_in, b_in, w_out, b_out, *, tb=None, tt=None):
    B, H = h.shape
    assert context.shape[0] == B and context.shape[2] == H
    T = context.shape[1]

    ctx_isz = jnp.dtype(context.dtype).itemsize
    par_isz = jnp.dtype(w_in.dtype).itemsize
    out_isz = jnp.dtype(h.dtype).itemsize

    cap = _vmem_capacity_bytes()
    budget = cap * 3 // 4                            # ~48 MiB on v7x, ~96 MiB on v5e/v6e
    # Resident parameters; budgeted for 2 buffers in case single-buffering is unavailable.
    params_bytes = 2 * (3 * H * H + 2 * H) * par_isz

    auto_tb, auto_tt = _choose_tiles(B, T, H, ctx_isz, budget, params_bytes)
    tb = auto_tb if tb is None else max(1, min(tb, B))
    tt = auto_tt if tt is None else max(1, min(tt, T))

    nb = pl.cdiv(B, tb)
    nt = pl.cdiv(T, tt)
    t_pad = nt * tt
    needs_mask = (T % tt) != 0

    # Explicit scoped-VMEM limit sized to the chosen tiles (the 16/32 MiB defaults would
    # otherwise cap the context tile well below what the hardware can hold).
    need = (params_bytes
            + 2 * tb * tt * H * ctx_isz                              # context (double-buffered)
            + tb * t_pad * 4 + 2 * tb * H * 4 + 2 * tb * 128 * 4     # scratch
            + 2 * 2 * tb * H * out_isz + 2 * tb * T * out_isz        # h / out / weights tiles
            + (4 << 20))                                             # compiler headroom
    vmem_limit = int(min(max(budget, need), cap * 96 // 100))

    kernel = _make_kernel(T, nt, needs_mask)
    out_shapes = (jax.ShapeDtypeStruct((B, H), h.dtype),
                  jax.ShapeDtypeStruct((B, T), h.dtype))
    scratch = [
        pltpu.VMEM((tb, H), jnp.float32),            # gamma_h
        pltpu.VMEM((tb, 1), jnp.float32),            # running max
        pltpu.VMEM((tb, 1), jnp.float32),            # running denominator
        pltpu.VMEM((tb, H), jnp.float32),            # c_t accumulator
        pltpu.VMEM((nt, tb, tt), jnp.float32),       # raw-score stash
    ]

    def build(single_buffer_params):
        param_kw = {}
        if single_buffer_params:
            # Grid-invariant parameters: fetched once (constant index_map), single buffer.
            param_kw = dict(pipeline_mode=pl.Buffered(1))
        in_specs = [
            pl.BlockSpec((tb, H), lambda i, t: (i, 0)),                 # h       (batch-tiled)
            pl.BlockSpec((tb, tt, H), lambda i, t: (i, t, 0)),          # context (batch+T tiled)
            pl.BlockSpec((H, H), lambda i, t: (0, 0), **param_kw),      # w_in    (resident)
            pl.BlockSpec((1, H), lambda i, t: (0, 0), **param_kw),      # b_in    (resident)
            pl.BlockSpec((2 * H, H), lambda i, t: (0, 0), **param_kw),  # w_out   (resident)
            pl.BlockSpec((1, H), lambda i, t: (0, 0), **param_kw),      # b_out   (resident)
        ]
        out_specs = (
            pl.BlockSpec((tb, H), lambda i, t: (i, 0)),                 # output  (last-T write)
            pl.BlockSpec((tb, T), lambda i, t: (i, 0)),                 # weights (last-T write)
        )
        return pl.pallas_call(
            kernel,
            grid=(nb, nt),
            in_specs=in_specs,
            out_specs=out_specs,
            out_shape=out_shapes,
            scratch_shapes=scratch,
            compiler_params=pltpu.CompilerParams(
                dimension_semantics=("parallel", "arbitrary"),
                vmem_limit_bytes=vmem_limit),
        )

    single_buf = hasattr(pl, "Buffered")
    try:
        return build(single_buf)(h, context, w_in, b_in, w_out, b_out)
    except Exception:
        if not single_buf:
            raise
        # pipeline_mode=pl.Buffered(1) unsupported on this jax/Mosaic version ->
        # fall back to default double-buffered parameter blocks.
        return build(False)(h, context, w_in, b_in, w_out, b_out)


# --------------------------------------------------------------------------------------
# Reference + test
# --------------------------------------------------------------------------------------
def _reference(h, context, w_in, b_in, w_out, b_out):
    gamma = h @ w_in + b_in
    scores = jnp.einsum('bth,bh->bt', context, gamma)
    weights = jax.nn.softmax(scores, axis=-1)
    c_t = jnp.einsum('bt,bth->bh', weights, context)
    out = jnp.tanh(jnp.concatenate([c_t, h], axis=1) @ w_out + b_out)
    return out, weights


if __name__ == "__main__":
    B, T, H = 2, 8, 32
    key = jax.random.PRNGKey(0)
    k_h, k_ctx, k_wi, k_bi, k_wo, k_bo = jax.random.split(key, 6)

    h = jax.random.normal(k_h, (B, H), dtype=jnp.float32)
    context = jax.random.normal(k_ctx, (B, T, H), dtype=jnp.float32)

    # Deterministic parameter init (PyTorch Linear default: U(-1/sqrt(in), 1/sqrt(in))).
    lim_in = 1.0 / (H ** 0.5)
    lim_out = 1.0 / ((2 * H) ** 0.5)
    w_in = jax.random.uniform(k_wi, (H, H), jnp.float32, -lim_in, lim_in)
    b_in = jax.random.uniform(k_bi, (1, H), jnp.float32, -lim_in, lim_in)
    w_out = jax.random.uniform(k_wo, (2 * H, H), jnp.float32, -lim_out, lim_out)
    b_out = jax.random.uniform(k_bo, (1, H), jnp.float32, -lim_out, lim_out)

    out, weights = luong_attention_forward(h, context, w_in, b_in, w_out, b_out)
    jax.block_until_ready((out, weights))

    ref_out, ref_w = _reference(h, context, w_in, b_in.reshape(-1), w_out, b_out.reshape(-1))
    # Softmax normalization is exact now; remaining differences are only matmul rounding.
    assert jnp.allclose(weights.sum(axis=-1), 1.0, atol=1e-5), "weights must sum to 1"
    assert jnp.allclose(out, ref_out, atol=1e-3, rtol=1e-3)
    assert jnp.allclose(weights, ref_w, atol=1e-3, rtol=1e-3)

    print("KERNEL_OK")
</pallas_src>

<mosaic_0001>
module attributes {stable_mosaic.version = 11 : i64} {
  func.func @kernel(%arg0: i32, %arg1: i32, %arg2: memref<2x32xf32, #tpu.memory_space<vmem>>, %arg3: memref<2x8x32xf32, #tpu.memory_space<vmem>>, %arg4: memref<32x32xf32, #tpu.memory_space<vmem>>, %arg5: memref<1x32xf32, #tpu.memory_space<vmem>>, %arg6: memref<64x32xf32, #tpu.memory_space<vmem>>, %arg7: memref<1x32xf32, #tpu.memory_space<vmem>>, %arg8: memref<2x32xf32, #tpu.memory_space<vmem>>, %arg9: memref<2x8xf32, #tpu.memory_space<vmem>>, %arg10: memref<2x32xf32, #tpu.memory_space<vmem>>, %arg11: memref<2x1xf32, #tpu.memory_space<vmem>>, %arg12: memref<2x1xf32, #tpu.memory_space<vmem>>, %arg13: memref<2x32xf32, #tpu.memory_space<vmem>>, %arg14: memref<1x2x8xf32, #tpu.memory_space<vmem>>) attributes {dimension_semantics = [#tpu.dimension_semantics<parallel>, #tpu.dimension_semantics<arbitrary>], iteration_bounds = array<i64: 1, 1>, scalar_prefetch = 0 : i64, scratch_operands = 5 : i64, tpu.core_type = #tpu.core_type<tc>, window_params = [{transform_indices = @transform_0, window_bounds = array<i64: 2, 32>}, {transform_indices = @transform_1, window_bounds = array<i64: 2, 8, 32>}, {pipeline_mode = #tpu.pipeline_mode<synchronous>, transform_indices = @transform_2, window_bounds = array<i64: 32, 32>}, {pipeline_mode = #tpu.pipeline_mode<synchronous>, transform_indices = @transform_3, window_bounds = array<i64: 1, 32>}, {pipeline_mode = #tpu.pipeline_mode<synchronous>, transform_indices = @transform_4, window_bounds = array<i64: 64, 32>}, {pipeline_mode = #tpu.pipeline_mode<synchronous>, transform_indices = @transform_5, window_bounds = array<i64: 1, 32>}, {transform_indices = @transform_6, window_bounds = array<i64: 2, 32>}, {transform_indices = @transform_7, window_bounds = array<i64: 2, 8>}]} {
    %c0_i32 = arith.constant 0 : i32
    %0 = arith.cmpi eq, %arg1, %c0_i32 : i32
    %1 = arith.extui %0 : i1 to i32
    %c0_i32_0 = arith.constant 0 : i32
    %2 = arith.cmpi ne, %1, %c0_i32_0 : i32
    scf.if %2 {
      %c0_25 = arith.constant 0 : index
      %c0_26 = arith.constant 0 : index
      %38 = vector.load %arg2[%c0_25, %c0_26] : memref<2x32xf32, #tpu.memory_space<vmem>>, vector<2x32xf32>
      %c0_27 = arith.constant 0 : index
      %c0_28 = arith.constant 0 : index
      %39 = vector.load %arg4[%c0_27, %c0_28] : memref<32x32xf32, #tpu.memory_space<vmem>>, vector<32x32xf32>
      %cst_29 = arith.constant dense<0.000000e+00> : vector<2x32xf32>
      %40 = tpu.matmul %38, %39, %cst_29 {dimension_numbers = #tpu.dot_dimension_numbers<[1], [0], [0], [1], [0, 0, 1, 1], [], []>} : vector<2x32xf32>, vector<32x32xf32>, vector<2x32xf32> -> vector<2x32xf32>
      %c0_30 = arith.constant 0 : index
      %c0_31 = arith.constant 0 : index
      %41 = vector.load %arg5[%c0_30, %c0_31] : memref<1x32xf32, #tpu.memory_space<vmem>>, vector<1x32xf32>
      %42 = vector.broadcast %41 : vector<1x32xf32> to vector<2x32xf32>
      %43 = arith.addf %40, %42 : vector<2x32xf32>
      %c0_32 = arith.constant 0 : index
      %c0_33 = arith.constant 0 : index
      %44 = vector.load %arg10[%c0_32, %c0_33] : memref<2x32xf32, #tpu.memory_space<vmem>>, vector<2x32xf32>
      tpu.vector_store %arg10[%c0_32, %c0_33], %43 {strides = array<i32>} : memref<2x32xf32, #tpu.memory_space<vmem>>, vector<2x32xf32>,
      %cst_34 = arith.constant 0xFF800000 : f32
      %45 = vector.broadcast %cst_34 : f32 to vector<2x1xf32>
      %c0_35 = arith.constant 0 : index
      %c0_36 = arith.constant 0 : index
      %46 = vector.load %arg11[%c0_35, %c0_36] : memref<2x1xf32, #tpu.memory_space<vmem>>, vector<2x1xf32>
      tpu.vector_store %arg11[%c0_35, %c0_36], %45 {strides = array<i32>} : memref<2x1xf32, #tpu.memory_space<vmem>>, vector<2x1xf32>,
      %cst_37 = arith.constant 0.000000e+00 : f32
      %47 = vector.broadcast %cst_37 : f32 to vector<2x1xf32>
      %c0_38 = arith.constant 0 : index
      %c0_39 = arith.constant 0 : index
      %48 = vector.load %arg12[%c0_38, %c0_39] : memref<2x1xf32, #tpu.memory_space<vmem>>, vector<2x1xf32>
      tpu.vector_store %arg12[%c0_38, %c0_39], %47 {strides = array<i32>} : memref<2x1xf32, #tpu.memory_space<vmem>>, vector<2x1xf32>,
      %cst_40 = arith.constant 0.000000e+00 : f32
      %49 = vector.broadcast %cst_40 : f32 to vector<2x32xf32>
      %c0_41 = arith.constant 0 : index
      %c0_42 = arith.constant 0 : index
      %50 = vector.load %arg13[%c0_41, %c0_42] : memref<2x32xf32, #tpu.memory_space<vmem>>, vector<2x32xf32>
      tpu.vector_store %arg13[%c0_41, %c0_42], %49 {strides = array<i32>} : memref<2x32xf32, #tpu.memory_space<vmem>>, vector<2x32xf32>,
    } else {
    }
    %c0 = arith.constant 0 : index
    %c0_1 = arith.constant 0 : index
    %c0_2 = arith.constant 0 : index
    %3 = vector.load %arg3[%c0, %c0_1, %c0_2] : memref<2x8x32xf32, #tpu.memory_space<vmem>>, vector<2x8x32xf32>
    %c0_3 = arith.constant 0 : index
    %c0_4 = arith.constant 0 : index
    %4 = vector.load %arg10[%c0_3, %c0_4] : memref<2x32xf32, #tpu.memory_space<vmem>>, vector<2x32xf32>
    %5 = vector.shape_cast %4 : vector<2x32xf32> to vector<2x1x32xf32>
    "tpu.trace_start"() <{level = 10 : i32, message = "bth,bsh->bts"}> : () -> ()
    %cst = arith.constant dense<0.000000e+00> : vector<2x8x1xf32>
    %6 = tpu.matmul %3, %5, %cst {dimension_numbers = #tpu.dot_dimension_numbers<[2], [2], [1], [1], [0, 0, 0, 1, 1, 1], [0], [0]>} : vector<2x8x32xf32>, vector<2x1x32xf32>, vector<2x8x1xf32> -> vector<2x8x1xf32>
    "tpu.trace_stop"() : () -> ()
    %7 = vector.shape_cast %6 : vector<2x8x1xf32> to vector<2x8xf32>
    %c0_5 = arith.constant 0 : index
    %c0_6 = arith.constant 0 : index
    %c0_7 = arith.constant 0 : index
    %8 = vector.load %arg14[%c0_5, %c0_6, %c0_7] : memref<1x2x8xf32, #tpu.memory_space<vmem>>, vector<1x2x8xf32>
    %9 = vector.shape_cast %8 : vector<1x2x8xf32> to vector<2x8xf32>
    %10 = vector.shape_cast %7 : vector<2x8xf32> to vector<1x2x8xf32>
    tpu.vector_store %arg14[%c0_5, %c0_6, %c0_7], %10 {strides = array<i32>} : memref<1x2x8xf32, #tpu.memory_space<vmem>>, vector<1x2x8xf32>,
    %c0_8 = arith.constant 0 : index
    %c0_9 = arith.constant 0 : index
    %11 = vector.load %arg11[%c0_8, %c0_9] : memref<2x1xf32, #tpu.memory_space<vmem>>, vector<2x1xf32>
    %cst_10 = arith.constant dense<0xFF800000> : vector<2xf32>
    %12 = vector.multi_reduction <maximumf>, %7, %cst_10 [1] : vector<2x8xf32> to vector<2xf32>
    %13 = vector.shape_cast %12 : vector<2xf32> to vector<2x1xf32>
    %14 = arith.maximumf %11, %13 : vector<2x1xf32>
    %15 = arith.subf %11, %14 : vector<2x1xf32>
    %16 = math.exp %15 : vector<2x1xf32>
    %17 = vector.broadcast %14 : vector<2x1xf32> to vector<2x8xf32>
    %18 = arith.subf %7, %17 : vector<2x8xf32>
    %19 = math.exp %18 : vector<2x8xf32>
    %c0_11 = arith.constant 0 : index
    %c0_12 = arith.constant 0 : index
    %20 = vector.load %arg12[%c0_11, %c0_12] : memref<2x1xf32, #tpu.memory_space<vmem>>, vector<2x1xf32>
    %21 = arith.mulf %16, %20 : vector<2x1xf32>
    %cst_13 = arith.constant dense<0.000000e+00> : vector<2xf32>
    %22 = vector.multi_reduction <add>, %19, %cst_13 [1] : vector<2x8xf32> to vector<2xf32>
    %23 = vector.shape_cast %22 : vector<2xf32> to vector<2x1xf32>
    %24 = arith.addf %21, %23 : vector<2x1xf32>
    %c0_14 = arith.constant 0 : index
    %c0_15 = arith.constant 0 : index
    %25 = vector.load %arg12[%c0_14, %c0_15] : memref<2x1xf32, #tpu.memory_space<vmem>>, vector<2x1xf32>
    tpu.vector_store %arg12[%c0_14, %c0_15], %24 {strides = array<i32>} : memref<2x1xf32, #tpu.memory_space<vmem>>, vector<2x1xf32>,
    %c0_16 = arith.constant 0 : index
    %c0_17 = arith.constant 0 : index
    %26 = vector.load %arg13[%c0_16, %c0_17] : memref<2x32xf32, #tpu.memory_space<vmem>>, vector<2x32xf32>
    %27 = vector.broadcast %16 : vector<2x1xf32> to vector<2x32xf32>
    %28 = arith.mulf %27, %26 : vector<2x32xf32>
    %29 = vector.shape_cast %19 : vector<2x8xf32> to vector<2x1x8xf32>
    "tpu.trace_start"() <{level = 10 : i32, message = "bst,bth->bsh"}> : () -> ()
    %cst_18 = arith.constant dense<0.000000e+00> : vector<2x1x32xf32>
    %30 = tpu.matmul %29, %3, %cst_18 {dimension_numbers = #tpu.dot_dimension_numbers<[2], [1], [1], [2], [0, 0, 0, 1, 1, 2], [0], [0]>} : vector<2x1x8xf32>, vector<2x8x32xf32>, vector<2x1x32xf32> -> vector<2x1x32xf32>
    "tpu.trace_stop"() : () -> ()
    %31 = vector.shape_cast %30 : vector<2x1x32xf32> to vector<2x32xf32>
    %32 = arith.addf %28, %31 : vector<2x32xf32>
    %c0_19 = arith.constant 0 : index
    %c0_20 = arith.constant 0 : index
    %33 = vector.load %arg13[%c0_19, %c0_20] : memref<2x32xf32, #tpu.memory_space<vmem>>, vector<2x32xf32>
    tpu.vector_store %arg13[%c0_19, %c0_20], %32 {strides = array<i32>} : memref<2x32xf32, #tpu.memory_space<vmem>>, vector<2x32xf32>,
    %c0_21 = arith.constant 0 : index
    %c0_22 = arith.constant 0 : index
    %34 = vector.load %arg11[%c0_21, %c0_22] : memref<2x1xf32, #tpu.memory_space<vmem>>, vector<2x1xf32>
    tpu.vector_store %arg11[%c0_21, %c0_22], %14 {strides = array<i32>} : memref<2x1xf32, #tpu.memory_space<vmem>>, vector<2x1xf32>,
    %c0_i32_23 = arith.constant 0 : i32
    %35 = arith.cmpi eq, %arg1, %c0_i32_23 : i32
    %36 = arith.extui %35 : i1 to i32
    %c0_i32_24 = arith.constant 0 : i32
    %37 = arith.cmpi ne, %36, %c0_i32_24 : i32
    scf.if %37 {
      %c0_25 = arith.constant 0 : index
      %c0_26 = arith.constant 0 : index
      %38 = vector.load %arg2[%c0_25, %c0_26] : memref<2x32xf32, #tpu.memory_space<vmem>>, vector<2x32xf32>
      %c0_27 = arith.constant 0 : index
      %c0_28 = arith.constant 0 : index
      %39 = vector.load %arg12[%c0_27, %c0_28] : memref<2x1xf32, #tpu.memory_space<vmem>>, vector<2x1xf32>
      %cst_29 = arith.constant 1.000000e+00 : f32
      %40 = vector.broadcast %cst_29 : f32 to vector<2x1xf32>
      %41 = arith.divf %40, %39 : vector<2x1xf32>
      %c0_30 = arith.constant 0 : index
      %c0_31 = arith.constant 0 : index
      %42 = vector.load %arg11[%c0_30, %c0_31] : memref<2x1xf32, #tpu.memory_space<vmem>>, vector<2x1xf32>
      %c0_32 = arith.constant 0 : index
      %c0_33 = arith.constant 0 : index
      %c0_34 = arith.constant 0 : index
      %43 = vector.load %arg14[%c0_32, %c0_33, %c0_34] : memref<1x2x8xf32, #tpu.memory_space<vmem>>, vector<1x2x8xf32>
      %44 = vector.shape_cast %43 : vector<1x2x8xf32> to vector<2x8xf32>
      %45 = vector.broadcast %42 : vector<2x1xf32> to vector<2x8xf32>
      %46 = arith.subf %44, %45 : vector<2x8xf32>
      %47 = math.exp %46 : vector<2x8xf32>
      %48 = vector.broadcast %41 : vector<2x1xf32> to vector<2x8xf32>
      %49 = arith.mulf %47, %48 : vector<2x8xf32>
      %c0_35 = arith.constant 0 : index
      %c0_36 = arith.constant 0 : index
      %50 = vector.load %arg9[%c0_35, %c0_36] : memref<2x8xf32, #tpu.memory_space<vmem>>, vector<2x8xf32>
      tpu.vector_store %arg9[%c0_35, %c0_36], %49 {strides = array<i32>} : memref<2x8xf32, #tpu.memory_space<vmem>>, vector<2x8xf32>,
      %c0_37 = arith.constant 0 : index
      %c0_38 = arith.constant 0 : index
      %51 = vector.load %arg13[%c0_37, %c0_38] : memref<2x32xf32, #tpu.memory_space<vmem>>, vector<2x32xf32>
      %52 = vector.broadcast %41 : vector<2x1xf32> to vector<2x32xf32>
      %53 = arith.mulf %51, %52 : vector<2x32xf32>
      %c0_39 = arith.constant 0 : index
      %c0_40 = arith.constant 0 : index
      %54 = vector.load %arg6[%c0_39, %c0_40] : memref<64x32xf32, #tpu.memory_space<vmem>>, vector<32x32xf32>
      %cst_41 = arith.constant dense<0.000000e+00> : vector<2x32xf32>
      %55 = tpu.matmul %53, %54, %cst_41 {dimension_numbers = #tpu.dot_dimension_numbers<[1], [0], [0], [1], [0, 0, 1, 1], [], []>} : vector<2x32xf32>, vector<32x32xf32>, vector<2x32xf32> -> vector<2x32xf32>
      %c32 = arith.constant 32 : index
      %c0_42 = arith.constant 0 : index
      %56 = vector.load %arg6[%c32, %c0_42] : memref<64x32xf32, #tpu.memory_space<vmem>>, vector<32x32xf32>
      %cst_43 = arith.constant dense<0.000000e+00> : vector<2x32xf32>
      %57 = tpu.matmul %38, %56, %cst_43 {dimension_numbers = #tpu.dot_dimension_numbers<[1], [0], [0], [1], [0, 0, 1, 1], [], []>} : vector<2x32xf32>, vector<32x32xf32>, vector<2x32xf32> -> vector<2x32xf32>
      %58 = arith.addf %55, %57 : vector<2x32xf32>
      %c0_44 = arith.constant 0 : index
      %c0_45 = arith.constant 0 : index
      %59 = vector.load %arg7[%c0_44, %c0_45] : memref<1x32xf32, #tpu.memory_space<vmem>>, vector<1x32xf32>
      %60 = vector.broadcast %59 : vector<1x32xf32> to vector<2x32xf32>
      %61 = arith.addf %58, %60 : vector<2x32xf32>
      %62 = math.tanh %61 : vector<2x32xf32>
      %c0_46 = arith.constant 0 : index
      %c0_47 = arith.constant 0 : index
      %63 = vector.load %arg8[%c0_46, %c0_47] : memref<2x32xf32, #tpu.memory_space<vmem>>, vector<2x32xf32>
      tpu.vector_store %arg8[%c0_46, %c0_47], %62 {strides = array<i32>} : memref<2x32xf32, #tpu.memory_space<vmem>>, vector<2x32xf32>,
    } else {
    }
    return
  }
  func.func @transform_0(%arg0: i32, %arg1: i32) -> (i32, i32) {
    %c0_i32 = arith.constant 0 : i32
    %c0_i32_0 = arith.constant 0 : i32
    return %arg0, %c0_i32 : i32, i32
  }
  func.func @transform_1(%arg0: i32, %arg1: i32) -> (i32, i32, i32) {
    %c0_i32 = arith.constant 0 : i32
    %c0_i32_0 = arith.constant 0 : i32
    return %arg0, %arg1, %c0_i32 : i32, i32, i32
  }
  func.func @transform_2(%arg0: i32, %arg1: i32) -> (i32, i32) {
    %c0_i32 = arith.constant 0 : i32
    %c0_i32_0 = arith.constant 0 : i32
    %c0_i32_1 = arith.constant 0 : i32
    return %c0_i32, %c0_i32_0 : i32, i32
  }
  func.func @transform_3(%arg0: i32, %arg1: i32) -> (i32, i32) {
    %c0_i32 = arith.constant 0 : i32
    %c0_i32_0 = arith.constant 0 : i32
    %c0_i32_1 = arith.constant 0 : i32
    return %c0_i32, %c0_i32_0 : i32, i32
  }
  func.func @transform_4(%arg0: i32, %arg1: i32) -> (i32, i32) {
    %c0_i32 = arith.constant 0 : i32
    %c0_i32_0 = arith.constant 0 : i32
    %c0_i32_1 = arith.constant 0 : i32
    return %c0_i32, %c0_i32_0 : i32, i32
  }
  func.func @transform_5(%arg0: i32, %arg1: i32) -> (i32, i32) {
    %c0_i32 = arith.constant 0 : i32
    %c0_i32_0 = arith.constant 0 : i32
    %c0_i32_1 = arith.constant 0 : i32
    return %c0_i32, %c0_i32_0 : i32, i32
  }
  func.func @transform_6(%arg0: i32, %arg1: i32) -> (i32, i32) {
    %c0_i32 = arith.constant 0 : i32
    %c0_i32_0 = arith.constant 0 : i32
    return %arg0, %c0_i32 : i32, i32
  }
  func.func @transform_7(%arg0: i32, %arg1: i32) -> (i32, i32) {
    %c0_i32 = arith.constant 0 : i32
    %c0_i32_0 = arith.constant 0 : i32
    return %arg0, %c0_i32 : i32, i32
  }
}

module attributes {stable_mosaic.version = 11 : i64} {
  func.func @kernel(%arg0: i32, %arg1: i32, %arg2: memref<2x32xf32, #tpu.memory_space<vmem>>, %arg3: memref<2x8x32xf32, #tpu.memory_space<vmem>>, %arg4: memref<32x32xf32, #tpu.memory_space<vmem>>, %arg5: memref<1x32xf32, #tpu.memory_space<vmem>>, %arg6: memref<64x32xf32, #tpu.memory_space<vmem>>, %arg7: memref<1x32xf32, #tpu.memory_space<vmem>>, %arg8: memref<2x32xf32, #tpu.memory_space<vmem>>, %arg9: memref<2x8xf32, #tpu.memory_space<vmem>>, %arg10: memref<2x32xf32, #tpu.memory_space<vmem>>, %arg11: memref<2x1xf32, #tpu.memory_space<vmem>>, %arg12: memref<2x1xf32, #tpu.memory_space<vmem>>, %arg13: memref<2x32xf32, #tpu.memory_space<vmem>>, %arg14: memref<1x2x8xf32, #tpu.memory_space<vmem>>) attributes {dimension_semantics = [#tpu.dimension_semantics<parallel>, #tpu.dimension_semantics<arbitrary>], iteration_bounds = array<i64: 1, 1>, scalar_prefetch = 0 : i64, scratch_operands = 5 : i64, tpu.core_type = #tpu.core_type<tc>, window_params = [{transform_indices = @transform_0, window_bounds = array<i64: 2, 32>}, {transform_indices = @transform_1, window_bounds = array<i64: 2, 8, 32>}, {pipeline_mode = #tpu.pipeline_mode<synchronous>, transform_indices = @transform_2, window_bounds = array<i64: 32, 32>}, {pipeline_mode = #tpu.pipeline_mode<synchronous>, transform_indices = @transform_3, window_bounds = array<i64: 1, 32>}, {pipeline_mode = #tpu.pipeline_mode<synchronous>, transform_indices = @transform_4, window_bounds = array<i64: 64, 32>}, {pipeline_mode = #tpu.pipeline_mode<synchronous>, transform_indices = @transform_5, window_bounds = array<i64: 1, 32>}, {transform_indices = @transform_6, window_bounds = array<i64: 2, 32>}, {transform_indices = @transform_7, window_bounds = array<i64: 2, 8>}]} {
    %c0_i32 = arith.constant 0 : i32
    %0 = arith.cmpi eq, %arg1, %c0_i32 : i32
    %1 = arith.extui %0 : i1 to i32
    %c0_i32_0 = arith.constant 0 : i32
    %2 = arith.cmpi ne, %1, %c0_i32_0 : i32
    scf.if %2 {
      %c0_25 = arith.constant 0 : index
      %c0_26 = arith.constant 0 : index
      %38 = vector.load %arg2[%c0_25, %c0_26] : memref<2x32xf32, #tpu.memory_space<vmem>>, vector<2x32xf32>
      %c0_27 = arith.constant 0 : index
      %c0_28 = arith.constant 0 : index
      %39 = vector.load %arg4[%c0_27, %c0_28] : memref<32x32xf32, #tpu.memory_space<vmem>>, vector<32x32xf32>
      %cst_29 = arith.constant dense<0.000000e+00> : vector<2x32xf32>
      %40 = tpu.matmul %38, %39, %cst_29 {dimension_numbers = #tpu.dot_dimension_numbers<[1], [0], [0], [1], [0, 0, 1, 1], [], []>} : vector<2x32xf32>, vector<32x32xf32>, vector<2x32xf32> -> vector<2x32xf32>
      %c0_30 = arith.constant 0 : index
      %c0_31 = arith.constant 0 : index
      %41 = vector.load %arg5[%c0_30, %c0_31] : memref<1x32xf32, #tpu.memory_space<vmem>>, vector<1x32xf32>
      %42 = vector.broadcast %41 : vector<1x32xf32> to vector<2x32xf32>
      %43 = arith.addf %40, %42 : vector<2x32xf32>
      %c0_32 = arith.constant 0 : index
      %c0_33 = arith.constant 0 : index
      %44 = vector.load %arg10[%c0_32, %c0_33] : memref<2x32xf32, #tpu.memory_space<vmem>>, vector<2x32xf32>
      tpu.vector_store %arg10[%c0_32, %c0_33], %43 {strides = array<i32>} : memref<2x32xf32, #tpu.memory_space<vmem>>, vector<2x32xf32>,
      %cst_34 = arith.constant 0xFF800000 : f32
      %45 = vector.broadcast %cst_34 : f32 to vector<2x1xf32>
      %c0_35 = arith.constant 0 : index
      %c0_36 = arith.constant 0 : index
      %46 = vector.load %arg11[%c0_35, %c0_36] : memref<2x1xf32, #tpu.memory_space<vmem>>, vector<2x1xf32>
      tpu.vector_store %arg11[%c0_35, %c0_36], %45 {strides = array<i32>} : memref<2x1xf32, #tpu.memory_space<vmem>>, vector<2x1xf32>,
      %cst_37 = arith.constant 0.000000e+00 : f32
      %47 = vector.broadcast %cst_37 : f32 to vector<2x1xf32>
      %c0_38 = arith.constant 0 : index
      %c0_39 = arith.constant 0 : index
      %48 = vector.load %arg12[%c0_38, %c0_39] : memref<2x1xf32, #tpu.memory_space<vmem>>, vector<2x1xf32>
      tpu.vector_store %arg12[%c0_38, %c0_39], %47 {strides = array<i32>} : memref<2x1xf32, #tpu.memory_space<vmem>>, vector<2x1xf32>,
      %cst_40 = arith.constant 0.000000e+00 : f32
      %49 = vector.broadcast %cst_40 : f32 to vector<2x32xf32>
      %c0_41 = arith.constant 0 : index
      %c0_42 = arith.constant 0 : index
      %50 = vector.load %arg13[%c0_41, %c0_42] : memref<2x32xf32, #tpu.memory_space<vmem>>, vector<2x32xf32>
      tpu.vector_store %arg13[%c0_41, %c0_42], %49 {strides = array<i32>} : memref<2x32xf32, #tpu.memory_space<vmem>>, vector<2x32xf32>,
    } else {
    }
    %c0 = arith.constant 0 : index
    %c0_1 = arith.constant 0 : index
    %c0_2 = arith.constant 0 : index
    %3 = vector.load %arg3[%c0, %c0_1, %c0_2] : memref<2x8x32xf32, #tpu.memory_space<vmem>>, vector<2x8x32xf32>
    %c0_3 = arith.constant 0 : index
    %c0_4 = arith.constant 0 : index
    %4 = vector.load %arg10[%c0_3, %c0_4] : memref<2x32xf32, #tpu.memory_space<vmem>>, vector<2x32xf32>
    %5 = vector.shape_cast %4 : vector<2x32xf32> to vector<2x1x32xf32>
    "tpu.trace_start"() <{level = 10 : i32, message = "bth,bsh->bts"}> : () -> ()
    %cst = arith.constant dense<0.000000e+00> : vector<2x8x1xf32>
    %6 = tpu.matmul %3, %5, %cst {dimension_numbers = #tpu.dot_dimension_numbers<[2], [2], [1], [1], [0, 0, 0, 1, 1, 1], [0], [0]>} : vector<2x8x32xf32>, vector<2x1x32xf32>, vector<2x8x1xf32> -> vector<2x8x1xf32>
    "tpu.trace_stop"() : () -> ()
    %7 = vector.shape_cast %6 : vector<2x8x1xf32> to vector<2x8xf32>
    %c0_5 = arith.constant 0 : index
    %c0_6 = arith.constant 0 : index
    %c0_7 = arith.constant 0 : index
    %8 = vector.load %arg14[%c0_5, %c0_6, %c0_7] : memref<1x2x8xf32, #tpu.memory_space<vmem>>, vector<1x2x8xf32>
    %9 = vector.shape_cast %8 : vector<1x2x8xf32> to vector<2x8xf32>
    %10 = vector.shape_cast %7 : vector<2x8xf32> to vector<1x2x8xf32>
    tpu.vector_store %arg14[%c0_5, %c0_6, %c0_7], %10 {strides = array<i32>} : memref<1x2x8xf32, #tpu.memory_space<vmem>>, vector<1x2x8xf32>,
    %c0_8 = arith.constant 0 : index
    %c0_9 = arith.constant 0 : index
    %11 = vector.load %arg11[%c0_8, %c0_9] : memref<2x1xf32, #tpu.memory_space<vmem>>, vector<2x1xf32>
    %cst_10 = arith.constant dense<0xFF800000> : vector<2xf32>
    %12 = vector.multi_reduction <maximumf>, %7, %cst_10 [1] : vector<2x8xf32> to vector<2xf32>
    %13 = vector.shape_cast %12 : vector<2xf32> to vector<2x1xf32>
    %14 = arith.maximumf %11, %13 : vector<2x1xf32>
    %15 = arith.subf %11, %14 : vector<2x1xf32>
    %16 = math.exp %15 : vector<2x1xf32>
    %17 = vector.broadcast %14 : vector<2x1xf32> to vector<2x8xf32>
    %18 = arith.subf %7, %17 : vector<2x8xf32>
    %19 = math.exp %18 : vector<2x8xf32>
    %c0_11 = arith.constant 0 : index
    %c0_12 = arith.constant 0 : index
    %20 = vector.load %arg12[%c0_11, %c0_12] : memref<2x1xf32, #tpu.memory_space<vmem>>, vector<2x1xf32>
    %21 = arith.mulf %16, %20 : vector<2x1xf32>
    %cst_13 = arith.constant dense<0.000000e+00> : vector<2xf32>
    %22 = vector.multi_reduction <add>, %19, %cst_13 [1] : vector<2x8xf32> to vector<2xf32>
    %23 = vector.shape_cast %22 : vector<2xf32> to vector<2x1xf32>
    %24 = arith.addf %21, %23 : vector<2x1xf32>
    %c0_14 = arith.constant 0 : index
    %c0_15 = arith.constant 0 : index
    %25 = vector.load %arg12[%c0_14, %c0_15] : memref<2x1xf32, #tpu.memory_space<vmem>>, vector<2x1xf32>
    tpu.vector_store %arg12[%c0_14, %c0_15], %24 {strides = array<i32>} : memref<2x1xf32, #tpu.memory_space<vmem>>, vector<2x1xf32>,
    %c0_16 = arith.constant 0 : index
    %c0_17 = arith.constant 0 : index
    %26 = vector.load %arg13[%c0_16, %c0_17] : memref<2x32xf32, #tpu.memory_space<vmem>>, vector<2x32xf32>
    %27 = vector.broadcast %16 : vector<2x1xf32> to vector<2x32xf32>
    %28 = arith.mulf %27, %26 : vector<2x32xf32>
    %29 = vector.shape_cast %19 : vector<2x8xf32> to vector<2x1x8xf32>
    "tpu.trace_start"() <{level = 10 : i32, message = "bst,bth->bsh"}> : () -> ()
    %cst_18 = arith.constant dense<0.000000e+00> : vector<2x1x32xf32>
    %30 = tpu.matmul %29, %3, %cst_18 {dimension_numbers = #tpu.dot_dimension_numbers<[2], [1], [1], [2], [0, 0, 0, 1, 1, 2], [0], [0]>} : vector<2x1x8xf32>, vector<2x8x32xf32>, vector<2x1x32xf32> -> vector<2x1x32xf32>
    "tpu.trace_stop"() : () -> ()
    %31 = vector.shape_cast %30 : vector<2x1x32xf32> to vector<2x32xf32>
    %32 = arith.addf %28, %31 : vector<2x32xf32>
    %c0_19 = arith.constant 0 : index
    %c0_20 = arith.constant 0 : index
    %33 = vector.load %arg13[%c0_19, %c0_20] : memref<2x32xf32, #tpu.memory_space<vmem>>, vector<2x32xf32>
    tpu.vector_store %arg13[%c0_19, %c0_20], %32 {strides = array<i32>} : memref<2x32xf32, #tpu.memory_space<vmem>>, vector<2x32xf32>,
    %c0_21 = arith.constant 0 : index
    %c0_22 = arith.constant 0 : index
    %34 = vector.load %arg11[%c0_21, %c0_22] : memref<2x1xf32, #tpu.memory_space<vmem>>, vector<2x1xf32>
    tpu.vector_store %arg11[%c0_21, %c0_22], %14 {strides = array<i32>} : memref<2x1xf32, #tpu.memory_space<vmem>>, vector<2x1xf32>,
    %c0_i32_23 = arith.constant 0 : i32
    %35 = arith.cmpi eq, %arg1, %c0_i32_23 : i32
    %36 = arith.extui %35 : i1 to i32
    %c0_i32_24 = arith.constant 0 : i32
    %37 = arith.cmpi ne, %36, %c0_i32_24 : i32
    scf.if %37 {
      %c0_25 = arith.constant 0 : index
      %c0_26 = arith.constant 0 : index
      %38 = vector.load %arg2[%c0_25, %c0_26] : memref<2x32xf32, #tpu.memory_space<vmem>>, vector<2x32xf32>
      %c0_27 = arith.constant 0 : index
      %c0_28 = arith.constant 0 : index
      %39 = vector.load %arg12[%c0_27, %c0_28] : memref<2x1xf32, #tpu.memory_space<vmem>>, vector<2x1xf32>
      %cst_29 = arith.constant 1.000000e+00 : f32
      %40 = vector.broadcast %cst_29 : f32 to vector<2x1xf32>
      %41 = arith.divf %40, %39 : vector<2x1xf32>
      %c0_30 = arith.constant 0 : index
      %c0_31 = arith.constant 0 : index
      %42 = vector.load %arg11[%c0_30, %c0_31] : memref<2x1xf32, #tpu.memory_space<vmem>>, vector<2x1xf32>
      %c0_32 = arith.constant 0 : index
      %c0_33 = arith.constant 0 : index
      %c0_34 = arith.constant 0 : index
      %43 = vector.load %arg14[%c0_32, %c0_33, %c0_34] : memref<1x2x8xf32, #tpu.memory_space<vmem>>, vector<1x2x8xf32>
      %44 = vector.shape_cast %43 : vector<1x2x8xf32> to vector<2x8xf32>
      %45 = vector.broadcast %42 : vector<2x1xf32> to vector<2x8xf32>
      %46 = arith.subf %44, %45 : vector<2x8xf32>
      %47 = math.exp %46 : vector<2x8xf32>
      %48 = vector.broadcast %41 : vector<2x1xf32> to vector<2x8xf32>
      %49 = arith.mulf %47, %48 : vector<2x8xf32>
      %c0_35 = arith.constant 0 : index
      %c0_36 = arith.constant 0 : index
      %50 = vector.load %arg9[%c0_35, %c0_36] : memref<2x8xf32, #tpu.memory_space<vmem>>, vector<2x8xf32>
      tpu.vector_store %arg9[%c0_35, %c0_36], %49 {strides = array<i32>} : memref<2x8xf32, #tpu.memory_space<vmem>>, vector<2x8xf32>,
      %c0_37 = arith.constant 0 : index
      %c0_38 = arith.constant 0 : index
      %51 = vector.load %arg13[%c0_37, %c0_38] : memref<2x32xf32, #tpu.memory_space<vmem>>, vector<2x32xf32>
      %52 = vector.broadcast %41 : vector<2x1xf32> to vector<2x32xf32>
      %53 = arith.mulf %51, %52 : vector<2x32xf32>
      %c0_39 = arith.constant 0 : index
      %c0_40 = arith.constant 0 : index
      %54 = vector.load %arg6[%c0_39, %c0_40] : memref<64x32xf32, #tpu.memory_space<vmem>>, vector<32x32xf32>
      %cst_41 = arith.constant dense<0.000000e+00> : vector<2x32xf32>
      %55 = tpu.matmul %53, %54, %cst_41 {dimension_numbers = #tpu.dot_dimension_numbers<[1], [0], [0], [1], [0, 0, 1, 1], [], []>} : vector<2x32xf32>, vector<32x32xf32>, vector<2x32xf32> -> vector<2x32xf32>
      %c32 = arith.constant 32 : index
      %c0_42 = arith.constant 0 : index
      %56 = vector.load %arg6[%c32, %c0_42] : memref<64x32xf32, #tpu.memory_space<vmem>>, vector<32x32xf32>
      %cst_43 = arith.constant dense<0.000000e+00> : vector<2x32xf32>
      %57 = tpu.matmul %38, %56, %cst_43 {dimension_numbers = #tpu.dot_dimension_numbers<[1], [0], [0], [1], [0, 0, 1, 1], [], []>} : vector<2x32xf32>, vector<32x32xf32>, vector<2x32xf32> -> vector<2x32xf32>
      %58 = arith.addf %55, %57 : vector<2x32xf32>
      %c0_44 = arith.constant 0 : index
      %c0_45 = arith.constant 0 : index
      %59 = vector.load %arg7[%c0_44, %c0_45] : memref<1x32xf32, #tpu.memory_space<vmem>>, vector<1x32xf32>
      %60 = vector.broadcast %59 : vector<1x32xf32> to vector<2x32xf32>
      %61 = arith.addf %58, %60 : vector<2x32xf32>
      %62 = math.tanh %61 : vector<2x32xf32>
      %c0_46 = arith.constant 0 : index
      %c0_47 = arith.constant 0 : index
      %63 = vector.load %arg8[%c0_46, %c0_47] : memref<2x32xf32, #tpu.memory_space<vmem>>, vector<2x32xf32>
      tpu.vector_store %arg8[%c0_46, %c0_47], %62 {strides = array<i32>} : memref<2x32xf32, #tpu.memory_space<vmem>>, vector<2x32xf32>,
    } else {
    }
    return
  }
  func.func @transform_0(%arg0: i32, %arg1: i32) -> (i32, i32) {
    %c0_i32 = arith.constant 0 : i32
    %c0_i32_0 = arith.constant 0 : i32
    return %arg0, %c0_i32 : i32, i32
  }
  func.func @transform_1(%arg0: i32, %arg1: i32) -> (i32, i32, i32) {
    %c0_i32 = arith.constant 0 : i32
    %c0_i32_0 = arith.constant 0 : i32
    return %arg0, %arg1, %c0_i32 : i32, i32, i32
  }
  func.func @transform_2(%arg0: i32, %arg1: i32) -> (i32, i32) {
    %c0_i32 = arith.constant 0 : i32
    %c0_i32_0 = arith.constant 0 : i32
    %c0_i32_1 = arith.constant 0 : i32
    return %c0_i32, %c0_i32_0 : i32, i32
  }
  func.func @transform_3(%arg0: i32, %arg1: i32) -> (i32, i32) {
    %c0_i32 = arith.constant 0 : i32
    %c0_i32_0 = arith.constant 0 : i32
    %c0_i32_1 = arith.constant 0 : i32
    return %c0_i32, %c0_i32_0 : i32, i32
  }
  func.func @transform_4(%arg0: i32, %arg1: i32) -> (i32, i32) {
    %c0_i32 = arith.constant 0 : i32
    %c0_i32_0 = arith.constant 0 : i32
    %c0_i32_1 = arith.constant 0 : i32
    return %c0_i32, %c0_i32_0 : i32, i32
  }
  func.func @transform_5(%arg0: i32, %arg1: i32) -> (i32, i32) {
    %c0_i32 = arith.constant 0 : i32
    %c0_i32_0 = arith.constant 0 : i32
    %c0_i32_1 = arith.constant 0 : i32
    return %c0_i32, %c0_i32_0 : i32, i32
  }
  func.func @transform_6(%arg0: i32, %arg1: i32) -> (i32, i32) {
    %c0_i32 = arith.constant 0 : i32
    %c0_i32_0 = arith.constant 0 : i32
    return %arg0, %c0_i32 : i32, i32
  }
  func.func @transform_7(%arg0: i32, %arg1: i32) -> (i32, i32) {
    %c0_i32 = arith.constant 0 : i32
    %c0_i32_0 = arith.constant 0 : i32
    return %arg0, %c0_i32 : i32, i32
  }
}

</mosaic_0001>

<llo_original>
// kernel: tpu_custom_call.1
$region0: #{tpu_custom_call.1}
  #allocation0 [shape = 'u32[]', space=smem, size = 0x4, offset = 0x4, fixed_abs, tag = 'smem constant byte address 0x4 - core index']
  #allocation1 [shape = 'u32[72,128]{1,0:T(1,128)}', space=vmem, size = 0x9000, scoped, tag = 'internal scratch']
  #allocation2 [shape = 'f32[2,32]{1,0:T(2,128)}', space=vmem, size = 0x400, scoped, tag = 'scratch operand']
  #allocation3 [shape = 'f32[2,1]{1,0:T(2,128)}', space=vmem, size = 0x400, scoped, tag = 'scratch operand']
  #allocation4 [shape = 'f32[2,1]{1,0:T(2,128)}', space=vmem, size = 0x400, scoped, tag = 'scratch operand']
  #allocation5 [shape = 'f32[2,32]{1,0:T(2,128)}', space=vmem, size = 0x400, scoped, tag = 'scratch operand']
  #allocation6 [shape = 'f32[1,2,8]{2,1,0:T(2,128)}', space=vmem, size = 0x400, scoped, tag = 'scratch operand']
  %s0 = inlined_call_operand.vmem [shape: f32[2,32], index: 0, kind: input, shape index: {}]
  %s1 = inlined_call_operand.vmem [shape: f32[2,8,32], index: 1, kind: input, shape index: {}]
  %s2 = inlined_call_operand.vmem [shape: f32[32,32], index: 2, kind: input, shape index: {}]
  %s3 = inlined_call_operand.vmem [shape: f32[1,32], index: 3, kind: input, shape index: {}]
  %s4 = inlined_call_operand.vmem [shape: f32[64,32], index: 4, kind: input, shape index: {}]
  %s5 = inlined_call_operand.vmem [shape: f32[1,32], index: 5, kind: input, shape index: {}]
  %s6 = inlined_call_operand.hbm [shape: f32[2,32], index: 6, kind: output, shape index: {0}]
  %s7 = inlined_call_operand.hbm [shape: f32[2,8], index: 7, kind: output, shape index: {1}]
  %8 = xla_tuple %s6, %s7
  %s9 = sld [smem:[#allocation0]]
  $region50: #{tpu_custom_call.1} parent=0
    _
  %s11 = ssub.s32 1, %s9
  %s12 = scalar_select 0, %s11, %s9
  $region1: #{tpu_custom_call.1} parent=0
    #allocation7 [shape = 'u8[1024]{0}', space=vmem, size = 0x400, scoped, tag = 'output window, operand 0, single buffered']
    #allocation8 [shape = 's32[1]{0}', space=sflag, size = 0x4, scoped, tag = 'scoped memory for tpu_custom_call.1']
    #allocation9 [shape = 'u8[1024]{0}', space=vmem, size = 0x400, scoped, tag = 'output window, operand 1, single buffered']
    #allocation10 [shape = 's32[1]{0}', space=sflag, size = 0x4, scoped, tag = 'scoped memory for tpu_custom_call.1']
    %13 = vsyncpa [#allocation8], 0
    %14 = vsyncpa [#allocation10], 0
    // Predicated region
    $region2: #{tpu_custom_call.1} parent=1 // pred_check
      _
    $region3: #{tpu_custom_call.1} parent=1 // pred_check_branch
      %16 = sbr.rel (0) target = $region5
    $region4: #{tpu_custom_call.1} parent=1 // pred_region
      _
    $region5: #{tpu_custom_call.1} parent=1 // pred_fallthru
      _
    // Predicated region
    $region6: #{tpu_custom_call.1} parent=1 // pred_check
      _
    $region7: #{tpu_custom_call.1} parent=1 // pred_check_branch
      %18 = sbr.rel (0) target = $region9
    $region8: #{tpu_custom_call.1} parent=1 // pred_region
      _
    $region9: #{tpu_custom_call.1} parent=1 // pred_fallthru
      _
    // Predicated region
    $region10: #{tpu_custom_call.1} parent=1 // pred_check
      _
    $region11: #{tpu_custom_call.1} parent=1 // pred_check_branch
      %20 = sbr.rel (0) target = $region13
    $region12: #{tpu_custom_call.1} parent=1 // pred_region
      _
    $region13: #{tpu_custom_call.1} parent=1 // pred_fallthru
      _
    // Predicated region
    $region14: #{tpu_custom_call.1} parent=1 // pred_check
      _
    $region15: #{tpu_custom_call.1} parent=1 // pred_check_branch
      %22 = sbr.rel (0) target = $region17
    $region16: #{tpu_custom_call.1} parent=1 // pred_region
      _
    $region17: #{tpu_custom_call.1} parent=1 // pred_fallthru
      _
    // Predicated region
    $region18: #{tpu_custom_call.1} parent=1 // pred_check
      _
    $region19: #{tpu_custom_call.1} parent=1 // pred_check_branch
      %24 = sbr.rel (0) target = $region21
    $region20: #{tpu_custom_call.1} parent=1 // pred_region
      _
    $region21: #{tpu_custom_call.1} parent=1 // pred_fallthru
      _
    // Predicated region
    $region22: #{tpu_custom_call.1} parent=1 // pred_check
      _
    $region23: #{tpu_custom_call.1} parent=1 // pred_check_branch
      %26 = sbr.rel (0) target = $region25
    $region24: #{tpu_custom_call.1} parent=1 // pred_region
      _
    $region25: #{tpu_custom_call.1} parent=1 // pred_fallthru
      _
    %p27 = scmp.eq.s32.totalorder 0, 0
    // Predicated region
    $region26: #{tpu_custom_call.1} parent=1 // pred_check
      %p28 = pneg %p27
    $region27: #{tpu_custom_call.1} parent=1 // pred_check_branch
      %30 = sbr.rel (%p28) target = $region29
    $region28: #{tpu_custom_call.1} parent=1 // pred_region
      %v31 = vld [vmem:[%s0] sm:$0x3]
      %v32 = vld [vmem:[%s2] sm:$0xff]
      %v33 = vld [vmem:[%s2 + $0x8] sm:$0xff]
      %v34 = vld [vmem:[%s2 + $0x10] sm:$0xff]
      %v35 = vld [vmem:[%s2 + $0x18] sm:$0xff]
      %v36 = vld [vmem:[%s3] sm:$0x1]
      %v38 = vperm.slane %v36, 0
      %vm40 = vcmask 261120
      %v42 = vsel %vm40, %v31, 0
      %44 = vmatpush.msra.mxu0 0.0
      %45 = vmatpush.msra.mxu0 0.0
      %46 = vmatpush.msra.mxu0 0.0
      %47 = vmatpush.msra.mxu0 0.0
      %48 = vmatpush.msra.mxu0 0.0
      %49 = vmatpush.msra.mxu0 0.0
      %50 = vmatpush.msra.mxu0 0.0
      %51 = vmatpush.msra.mxu0 0.0
      %52 = vmatpush.msra.mxu0 0.0
      %53 = vmatpush.msra.mxu0 0.0
      %54 = vmatpush.msra.mxu0 0.0
      %55 = vmatpush.msra.mxu0 0.0
      %56 = vmatpush.msra.mxu0 %v35
      %57 = vmatpush.msra.mxu0 %v34
      %58 = vmatpush.msra.mxu0 %v33
      %59 = vmatpush.msra.mxu0 %v32
      %60 = vmatmul.f32.gmra.mxu0 %v42
      %v61 = vpop.f32.mrf.mxu0
      %v62 = vadd.f32 %v38, %v61
      %63 = vdwg.mxu0
      %vm64 = vcmask 254976
      %65 = vst.msk [vmem:[#allocation2] sm:$0x3] %vm64, %v62
      %vm66 = vcmask 1024
      %67 = vst.msk [vmem:[#allocation3] sm:$0x3] %vm66, -inf
      %68 = vst.msk [vmem:[#allocation4] sm:$0x3] %vm66, 0.0
      %69 = vst.msk [vmem:[#allocation5] sm:$0x3] %vm64, 0.0
    $region29: #{tpu_custom_call.1} parent=1 // pred_fallthru
      _
    %v70 = vld [vmem:[%s1] sm:$0xff]
    %v71 = vld [vmem:[%s1 + $0x8] sm:$0xff]
    %v72 = vld [vmem:[#allocation2] sm:$0x3]
    %v74 = vrot.slane %v72, 1
    %v75 = vperm.slane %v72, 0
    %v77 = vmul.f32 %v70, %v75
    %vm78 = vcmask 261120
    %v79 = vsel %vm78, %v77, 0.0
    %80 = vadd.xlane.f32.xlu0 %v79
    %v81 = vpop.xlane.xlu0 %80
    %v82 = vperm.slane %v74, 0
    %v84 = vmul.f32 %v71, %v82
    %v85 = vsel %vm78, %v84, 0.0
    %86 = vadd.xlane.f32.xlu0 %v85
    %v87 = vpop.xlane.xlu0 %86
    %90 = vset.pattern.permute.xlu0 0
    %91 = vperm.xlu0 %90, %v81
    %v92 = vpop.permute.xlu0 %91
    %93 = vset.pattern.permute.xlu0 0
    %94 = vperm.xlu0 %93, %v87
    %v95 = vpop.permute.xlu0 %94
    %v96 = vlaneseq
    %v97 = vand.u32 %v96, 127
    %v98 = vperm.slane %v92, %v97
    %v99 = vperm.slane %v95, %v97
    %vm100 = vcmask 1041409
    %v101 = vsel %vm100, %v99, %v98
    %vm103 = vcmask 58368
    %104 = vst.msk [vmem:[#allocation6] sm:$0x3] %vm103, %v101
    %v105 = vld [vmem:[#allocation3] sm:$0x3]
    %v106 = vsel %vm103, %v101, -inf
    %107 = vmax.xlane.f32.xlu0 %v106
    %v108 = vpop.xlane.xlu0 %107
    %v109 = vmax.f32 %v105, %v108
    %v110 = vsub.f32 %v105, %v109
    %v111 = vmul.f32 %v110, 1.442695
    %v112 = vpow.pop %v111
    %114 = vset.pattern.permute.xlu0 0
    %115 = vperm.xlu0 %114, %v109
    %v116 = vpop.permute.xlu0 %115
    %v117 = vperm.slane %v116, 0
    %v118 = vperm.slane %v116, 1
    %v121 = vsub.f32 %v81, %v117
    %v122 = vsub.f32 %v87, %v118
    %v123 = vmul.f32 %v121, 1.442695
    %v124 = vpow.pop %v123
    %v125 = vmul.f32 %v122, 1.442695
    %v126 = vpow.pop %v125
    %v127 = vld [vmem:[#allocation4] sm:$0x3]
    %v128 = vmul.f32 %v112, %v127
    %131 = vset.pattern.permute.xlu0 0
    %132 = vperm.xlu0 %131, %v124
    %v133 = vpop.permute.xlu0 %132
    %134 = vset.pattern.permute.xlu0 0
    %135 = vperm.xlu0 %134, %v126
    %v136 = vpop.permute.xlu0 %135
    %v137 = vperm.slane %v133, %v97
    %v138 = vperm.slane %v136, %v97
    %v139 = vsel %vm100, %v138, %v137
    %v141 = vsel %vm103, %v139, 0.0
    %142 = vadd.xlane.f32.xlu0 %v141
    %v143 = vpop.xlane.xlu0 %142
    %v144 = vadd.f32 %v128, %v143
    %vm145 = vcmask 1024
    %146 = vst.msk [vmem:[#allocation4] sm:$0x3] %vm145, %v144
    %v147 = vld [vmem:[#allocation5] sm:$0x3]
    %149 = vset.pattern.permute.xlu0 0
    %150 = vperm.xlu0 %149, %v112
    %v151 = vpop.permute.xlu0 %150
    %v153 = vmul.f32 %v151, %v147
    %vm154 = vcmask 64512
    %v155 = vsel %vm154, %v137, 0
    %157 = vmatpush.msra.mxu0 0.0
    %158 = vmatpush.msra.mxu0 0.0
    %159 = vmatpush.msra.mxu0 0.0
    %160 = vmatpush.msra.mxu0 0.0
    %161 = vmatpush.msra.mxu0 0.0
    %162 = vmatpush.msra.mxu0 0.0
    %163 = vmatpush.msra.mxu0 0.0
    %164 = vmatpush.msra.mxu0 0.0
    %165 = vmatpush.msra.mxu0 0.0
    %166 = vmatpush.msra.mxu0 0.0
    %167 = vmatpush.msra.mxu0 0.0
    %168 = vmatpush.msra.mxu0 0.0
    %169 = vmatpush.msra.mxu0 0.0
    %170 = vmatpush.msra.mxu0 0.0
    %171 = vmatpush.msra.mxu0 0.0
    %172 = vmatpush.msra.mxu0 %v70
    %173 = vmatmul.f32.gmra.mxu0 %v155
    %v174 = vpop.f32.mrf.mxu0
    %v175 = vadd.f32 0.0, %v174
    %176 = vdwg.mxu0
    %v177 = vsel %vm154, %v138, 0
    %179 = vmatpush.msra.mxu0 0.0
    %180 = vmatpush.msra.mxu0 0.0
    %181 = vmatpush.msra.mxu0 0.0
    %182 = vmatpush.msra.mxu0 0.0
    %183 = vmatpush.msra.mxu0 0.0
    %184 = vmatpush.msra.mxu0 0.0
    %185 = vmatpush.msra.mxu0 0.0
    %186 = vmatpush.msra.mxu0 0.0
    %187 = vmatpush.msra.mxu0 0.0
    %188 = vmatpush.msra.mxu0 0.0
    %189 = vmatpush.msra.mxu0 0.0
    %190 = vmatpush.msra.mxu0 0.0
    %191 = vmatpush.msra.mxu0 0.0
    %192 = vmatpush.msra.mxu0 0.0
    %193 = vmatpush.msra.mxu0 0.0
    %194 = vmatpush.msra.mxu0 %v71
    %195 = vmatmul.f32.gmra.mxu0 %v177
    %v196 = vpop.f32.mrf.mxu0
    %v197 = vadd.f32 0.0, %v196
    %198 = vdwg.mxu0
    %v201 = vrot.slane %v197, 7
    %v202 = vsel %vm100, %v201, %v175
    %v204 = vadd.f32 %v153, %v202
    %vm205 = vcmask 254976
    %206 = vst.msk [vmem:[#allocation5] sm:$0x3] %vm205, %v204
    %207 = vst.msk [vmem:[#allocation3] sm:$0x3] %vm145, %v109
    // Predicated region
    $region30: #{tpu_custom_call.1} parent=1 // pred_check
      %p208 = pneg %p27
    $region31: #{tpu_custom_call.1} parent=1 // pred_check_branch
      %210 = sbr.rel (%p208) target = $region33
    $region32: #{tpu_custom_call.1} parent=1 // pred_region
      %v211 = vld [vmem:[%s0] sm:$0x3]
      %v212 = vld [vmem:[#allocation4] sm:$0x3]
      %v213 = vrcp.pop %v212
      %v214 = vmul.f32 %v212, %v213
      %v215 = vsub.f32 1.0, %v214
      %v216 = vmul.f32 %v213, %v215
      %v217 = vadd.f32 %v213, %v216
      %vm218 = vweird.f32 %v212
      %vm219 = vweird.f32 %v213
      %vm220 = vmor %vm218, %vm219
      %v221 = vsel %vm220, %v213, %v217
      %v222 = vand.u32 2147483647, %v212
      %vm223 = vcmp.eq.f32.partialorder %v222, 8.507059e+37
      %v224 = vand.u32 %v212, 2147483648
      %v225 = vor.u32 1.1754944e-38, %v224
      %v226 = vsel %vm223, %v225, %v221
      %v227 = vmul.f32 1.0, %v226
      %v228 = vld [vmem:[#allocation3] sm:$0x3]
      %v229 = vld [vmem:[#allocation6] sm:$0x3]
      %231 = vset.pattern.permute.xlu0 0
      %232 = vperm.xlu0 %231, %v228
      %v233 = vpop.permute.xlu0 %232
      %v235 = vsub.f32 %v229, %v233
      %v236 = vmul.f32 %v235, 1.442695
      %v237 = vpow.pop %v236
      %239 = vset.pattern.permute.xlu0 0
      %240 = vperm.xlu0 %239, %v227
      %v241 = vpop.permute.xlu0 %240
      %v243 = vmul.f32 %v237, %v241
      %244 = vst.msk [vmem:[#allocation9] sm:$0x3] %vm103, %v243
      %v245 = vld [vmem:[#allocation5] sm:$0x3]
      %v246 = vmul.f32 %v245, %v241
      %v247 = vld [vmem:[%s4] sm:$0xff]
      %v248 = vld [vmem:[%s4 + $0x8] sm:$0xff]
      %v249 = vld [vmem:[%s4 + $0x10] sm:$0xff]
      %v250 = vld [vmem:[%s4 + $0x18] sm:$0xff]
      %v251 = vld [vmem:[%s4 + $0x20] sm:$0xff]
      %v252 = vld [vmem:[%s4 + $0x28] sm:$0xff]
      %v253 = vld [vmem:[%s4 + $0x30] sm:$0xff]
      %v254 = vld [vmem:[%s4 + $0x38] sm:$0xff]
      %v256 = vsel %vm78, %v211, 0
      %258 = vmatpush.msra.mxu0 0.0
      %259 = vmatpush.msra.mxu0 0.0
      %260 = vmatpush.msra.mxu0 0.0
      %261 = vmatpush.msra.mxu0 0.0
      %262 = vmatpush.msra.mxu0 0.0
      %263 = vmatpush.msra.mxu0 0.0
      %264 = vmatpush.msra.mxu0 0.0
      %265 = vmatpush.msra.mxu0 0.0
      %266 = vmatpush.msra.mxu0 0.0
      %267 = vmatpush.msra.mxu0 0.0
      %268 = vmatpush.msra.mxu0 0.0
      %269 = vmatpush.msra.mxu0 0.0
      %270 = vmatpush.msra.mxu0 %v254
      %271 = vmatpush.msra.mxu0 %v253
      %272 = vmatpush.msra.mxu0 %v252
      %273 = vmatpush.msra.mxu0 %v251
      %274 = vmatmul.f32.gmra.mxu0 %v256
      %v275 = vpop.f32.mrf.mxu0
      %v276 = vadd.f32 0.0, %v275
      %277 = vdwg.mxu0
      %v279 = vsel %vm78, %v246, 0
      %281 = vmatpush.msra.mxu0 0.0
      %282 = vmatpush.msra.mxu0 0.0
      %283 = vmatpush.msra.mxu0 0.0
      %284 = vmatpush.msra.mxu0 0.0
      %285 = vmatpush.msra.mxu0 0.0
      %286 = vmatpush.msra.mxu0 0.0
      %287 = vmatpush.msra.mxu0 0.0
      %288 = vmatpush.msra.mxu0 0.0
      %289 = vmatpush.msra.mxu0 0.0
      %290 = vmatpush.msra.mxu0 0.0
      %291 = vmatpush.msra.mxu0 0.0
      %292 = vmatpush.msra.mxu0 0.0
      %293 = vmatpush.msra.mxu0 %v250
      %294 = vmatpush.msra.mxu0 %v249
      %295 = vmatpush.msra.mxu0 %v248
      %296 = vmatpush.msra.mxu0 %v247
      %297 = vmatmul.f32.gmra.mxu0 %v279
      %v298 = vpop.f32.mrf.mxu0
      %v299 = vadd.f32 %v276, %v298
      %300 = vdwg.mxu0
      %v301 = vld [vmem:[%s5] sm:$0x1]
      %v303 = vperm.slane %v301, 0
      %v305 = vadd.f32 %v299, %v303
      %v306 = vtanh.pop %v305
      %307 = vst.msk [vmem:[#allocation7] sm:$0x3] %vm205, %v306
    $region33: #{tpu_custom_call.1} parent=1 // pred_fallthru
      _
    // Predicated region
    $region34: #{tpu_custom_call.1} parent=1 // pred_check
      _
    $region35: #{tpu_custom_call.1} parent=1 // pred_check_branch
      %309 = sbr.rel (0) target = $region37
    $region36: #{tpu_custom_call.1} parent=1 // pred_region
      %311 = vsyncadd [#allocation8], 0
      %s313 = sshll.u32 [#allocation7], 4
      %s314 = int_to_ptr.vmem [resolvable:$true] %s313
      %s315 = sshll.u32 %s6, 4
      %s316 = int_to_ptr.hbm [resolvable:$true] %s315
      %318 = dma.vmem_to_hbm [thread:$0]  %s314, 32, %s316, [#allocation8]
    $region37: #{tpu_custom_call.1} parent=1 // pred_fallthru
      _
    // Predicated region
    $region38: #{tpu_custom_call.1} parent=1 // pred_check
      _
    $region39: #{tpu_custom_call.1} parent=1 // pred_check_branch
      %320 = sbr.rel (0) target = $region41
    $region40: #{tpu_custom_call.1} parent=1 // pred_region
      %322 = vsyncadd [#allocation10], 0
      %s324 = sshll.u32 [#allocation9], 4
      %s325 = int_to_ptr.vmem [resolvable:$true] %s324
      %s326 = sshll.u32 %s7, 4
      %s327 = int_to_ptr.hbm [resolvable:$true] %s326
      %329 = dma.vmem_to_hbm [thread:$0]  %s325, 32, %s327, [#allocation10]
    $region41: #{tpu_custom_call.1} parent=1 // pred_fallthru
      _
    // Predicated region
    $region42: #{tpu_custom_call.1} parent=1 // pred_check
      _
    $region43: #{tpu_custom_call.1} parent=1 // pred_check_branch
      %331 = sbr.rel (0) target = $region45
    $region44: #{tpu_custom_call.1} parent=1 // pred_region
      %333 = dma.done [#allocation8], 32
    $region45: #{tpu_custom_call.1} parent=1 // pred_fallthru
      _
    // Predicated region
    $region46: #{tpu_custom_call.1} parent=1 // pred_check
      _
    $region47: #{tpu_custom_call.1} parent=1 // pred_check_branch
      %335 = sbr.rel (0) target = $region49
    $region48: #{tpu_custom_call.1} parent=1 // pred_region
      %337 = dma.done [#allocation10], 32
    $region49: #{tpu_custom_call.1} parent=1 // pred_fallthru
      _
    %338 = vsyncpa [#allocation8], 1
    %339 = vsyncpa [#allocation10], 1

// kernel: tpu_custom_call.1
$region0: #{tpu_custom_call.1}
  #allocation0 [shape = 'u32[]', space=smem, size = 0x4, offset = 0x4, fixed_abs, tag = 'smem constant byte address 0x4 - core index']
  #allocation1 [shape = 'u32[72,128]{1,0:T(1,128)}', space=vmem, size = 0x9000, scoped, tag = 'internal scratch']
  #allocation2 [shape = 'f32[2,32]{1,0:T(2,128)}', space=vmem, size = 0x400, scoped, tag = 'scratch operand']
  #allocation3 [shape = 'f32[2,1]{1,0:T(2,128)}', space=vmem, size = 0x400, scoped, tag = 'scratch operand']
  #allocation4 [shape = 'f32[2,1]{1,0:T(2,128)}', space=vmem, size = 0x400, scoped, tag = 'scratch operand']
  #allocation5 [shape = 'f32[2,32]{1,0:T(2,128)}', space=vmem, size = 0x400, scoped, tag = 'scratch operand']
  #allocation6 [shape = 'f32[1,2,8]{2,1,0:T(2,128)}', space=vmem, size = 0x400, scoped, tag = 'scratch operand']
  %s0 = inlined_call_operand.vmem [shape: f32[2,32], index: 0, kind: input, shape index: {}]
  %s1 = inlined_call_operand.vmem [shape: f32[2,8,32], index: 1, kind: input, shape index: {}]
  %s2 = inlined_call_operand.vmem [shape: f32[32,32], index: 2, kind: input, shape index: {}]
  %s3 = inlined_call_operand.vmem [shape: f32[1,32], index: 3, kind: input, shape index: {}]
  %s4 = inlined_call_operand.vmem [shape: f32[64,32], index: 4, kind: input, shape index: {}]
  %s5 = inlined_call_operand.vmem [shape: f32[1,32], index: 5, kind: input, shape index: {}]
  %s6 = inlined_call_operand.hbm [shape: f32[2,32], index: 6, kind: output, shape index: {0}]
  %s7 = inlined_call_operand.hbm [shape: f32[2,8], index: 7, kind: output, shape index: {1}]
  %8 = xla_tuple %s6, %s7
  %s9 = sld [smem:[#allocation0]]
  $region50: #{tpu_custom_call.1} parent=0
    _
  %s11 = ssub.s32 1, %s9
  %s12 = scalar_select 0, %s11, %s9
  $region1: #{tpu_custom_call.1} parent=0
    #allocation7 [shape = 'u8[1024]{0}', space=vmem, size = 0x400, scoped, tag = 'output window, operand 0, single buffered']
    #allocation8 [shape = 's32[1]{0}', space=sflag, size = 0x4, scoped, tag = 'scoped memory for tpu_custom_call.1']
    #allocation9 [shape = 'u8[1024]{0}', space=vmem, size = 0x400, scoped, tag = 'output window, operand 1, single buffered']
    #allocation10 [shape = 's32[1]{0}', space=sflag, size = 0x4, scoped, tag = 'scoped memory for tpu_custom_call.1']
    %13 = vsyncpa [#allocation8], 0
    %14 = vsyncpa [#allocation10], 0
    // Predicated region
    $region2: #{tpu_custom_call.1} parent=1 // pred_check
      _
    $region3: #{tpu_custom_call.1} parent=1 // pred_check_branch
      %16 = sbr.rel (0) target = $region5
    $region4: #{tpu_custom_call.1} parent=1 // pred_region
      _
    $region5: #{tpu_custom_call.1} parent=1 // pred_fallthru
      _
    // Predicated region
    $region6: #{tpu_custom_call.1} parent=1 // pred_check
      _
    $region7: #{tpu_custom_call.1} parent=1 // pred_check_branch
      %18 = sbr.rel (0) target = $region9
    $region8: #{tpu_custom_call.1} parent=1 // pred_region
      _
    $region9: #{tpu_custom_call.1} parent=1 // pred_fallthru
      _
    // Predicated region
    $region10: #{tpu_custom_call.1} parent=1 // pred_check
      _
    $region11: #{tpu_custom_call.1} parent=1 // pred_check_branch
      %20 = sbr.rel (0) target = $region13
    $region12: #{tpu_custom_call.1} parent=1 // pred_region
      _
    $region13: #{tpu_custom_call.1} parent=1 // pred_fallthru
      _
    // Predicated region
    $region14: #{tpu_custom_call.1} parent=1 // pred_check
      _
    $region15: #{tpu_custom_call.1} parent=1 // pred_check_branch
      %22 = sbr.rel (0) target = $region17
    $region16: #{tpu_custom_call.1} parent=1 // pred_region
      _
    $region17: #{tpu_custom_call.1} parent=1 // pred_fallthru
      _
    // Predicated region
    $region18: #{tpu_custom_call.1} parent=1 // pred_check
      _
    $region19: #{tpu_custom_call.1} parent=1 // pred_check_branch
      %24 = sbr.rel (0) target = $region21
    $region20: #{tpu_custom_call.1} parent=1 // pred_region
      _
    $region21: #{tpu_custom_call.1} parent=1 // pred_fallthru
      _
    // Predicated region
    $region22: #{tpu_custom_call.1} parent=1 // pred_check
      _
    $region23: #{tpu_custom_call.1} parent=1 // pred_check_branch
      %26 = sbr.rel (0) target = $region25
    $region24: #{tpu_custom_call.1} parent=1 // pred_region
      _
    $region25: #{tpu_custom_call.1} parent=1 // pred_fallthru
      _
    %p27 = scmp.eq.s32.totalorder 0, 0
    // Predicated region
    $region26: #{tpu_custom_call.1} parent=1 // pred_check
      %p28 = pneg %p27
    $region27: #{tpu_custom_call.1} parent=1 // pred_check_branch
      %30 = sbr.rel (%p28) target = $region29
    $region28: #{tpu_custom_call.1} parent=1 // pred_region
      %v31 = vld [vmem:[%s0] sm:$0x3]
      %v32 = vld [vmem:[%s2] sm:$0xff]
      %v33 = vld [vmem:[%s2 + $0x8] sm:$0xff]
      %v34 = vld [vmem:[%s2 + $0x10] sm:$0xff]
      %v35 = vld [vmem:[%s2 + $0x18] sm:$0xff]
      %v36 = vld [vmem:[%s3] sm:$0x1]
      %v38 = vperm.slane %v36, 0
      %vm40 = vcmask 261120
      %v42 = vsel %vm40, %v31, 0
      %44 = vmatpush.msra.mxu0 0.0
      %45 = vmatpush.msra.mxu0 0.0
      %46 = vmatpush.msra.mxu0 0.0
      %47 = vmatpush.msra.mxu0 0.0
      %48 = vmatpush.msra.mxu0 0.0
      %49 = vmatpush.msra.mxu0 0.0
      %50 = vmatpush.msra.mxu0 0.0
      %51 = vmatpush.msra.mxu0 0.0
      %52 = vmatpush.msra.mxu0 0.0
      %53 = vmatpush.msra.mxu0 0.0
      %54 = vmatpush.msra.mxu0 0.0
      %55 = vmatpush.msra.mxu0 0.0
      %56 = vmatpush.msra.mxu0 %v35
      %57 = vmatpush.msra.mxu0 %v34
      %58 = vmatpush.msra.mxu0 %v33
      %59 = vmatpush.msra.mxu0 %v32
      %60 = vmatmul.f32.gmra.mxu0 %v42
      %v61 = vpop.f32.mrf.mxu0
      %v62 = vadd.f32 %v38, %v61
      %63 = vdwg.mxu0
      %vm64 = vcmask 254976
      %65 = vst.msk [vmem:[#allocation2] sm:$0x3] %vm64, %v62
      %vm66 = vcmask 1024
      %67 = vst.msk [vmem:[#allocation3] sm:$0x3] %vm66, -inf
      %68 = vst.msk [vmem:[#allocation4] sm:$0x3] %vm66, 0.0
      %69 = vst.msk [vmem:[#allocation5] sm:$0x3] %vm64, 0.0
    $region29: #{tpu_custom_call.1} parent=1 // pred_fallthru
      _
    %v70 = vld [vmem:[%s1] sm:$0xff]
    %v71 = vld [vmem:[%s1 + $0x8] sm:$0xff]
    %v72 = vld [vmem:[#allocation2] sm:$0x3]
    %v74 = vrot.slane %v72, 1
    %v75 = vperm.slane %v72, 0
    %v77 = vmul.f32 %v70, %v75
    %vm78 = vcmask 261120
    %v79 = vsel %vm78, %v77, 0.0
    %80 = vadd.xlane.f32.xlu0 %v79
    %v81 = vpop.xlane.xlu0 %80
    %v82 = vperm.slane %v74, 0
    %v84 = vmul.f32 %v71, %v82
    %v85 = vsel %vm78, %v84, 0.0
    %86 = vadd.xlane.f32.xlu0 %v85
    %v87 = vpop.xlane.xlu0 %86
    %90 = vset.pattern.permute.xlu0 0
    %91 = vperm.xlu0 %90, %v81
    %v92 = vpop.permute.xlu0 %91
    %93 = vset.pattern.permute.xlu0 0
    %94 = vperm.xlu0 %93, %v87
    %v95 = vpop.permute.xlu0 %94
    %v96 = vlaneseq
    %v97 = vand.u32 %v96, 127
    %v98 = vperm.slane %v92, %v97
    %v99 = vperm.slane %v95, %v97
    %vm100 = vcmask 1041409
    %v101 = vsel %vm100, %v99, %v98
    %vm103 = vcmask 58368
    %104 = vst.msk [vmem:[#allocation6] sm:$0x3] %vm103, %v101
    %v105 = vld [vmem:[#allocation3] sm:$0x3]
    %v106 = vsel %vm103, %v101, -inf
    %107 = vmax.xlane.f32.xlu0 %v106
    %v108 = vpop.xlane.xlu0 %107
    %v109 = vmax.f32 %v105, %v108
    %v110 = vsub.f32 %v105, %v109
    %v111 = vmul.f32 %v110, 1.442695
    %v112 = vpow.pop %v111
    %114 = vset.pattern.permute.xlu0 0
    %115 = vperm.xlu0 %114, %v109
    %v116 = vpop.permute.xlu0 %115
    %v117 = vperm.slane %v116, 0
    %v118 = vperm.slane %v116, 1
    %v121 = vsub.f32 %v81, %v117
    %v122 = vsub.f32 %v87, %v118
    %v123 = vmul.f32 %v121, 1.442695
    %v124 = vpow.pop %v123
    %v125 = vmul.f32 %v122, 1.442695
    %v126 = vpow.pop %v125
    %v127 = vld [vmem:[#allocation4] sm:$0x3]
    %v128 = vmul.f32 %v112, %v127
    %131 = vset.pattern.permute.xlu0 0
    %132 = vperm.xlu0 %131, %v124
    %v133 = vpop.permute.xlu0 %132
    %134 = vset.pattern.permute.xlu0 0
    %135 = vperm.xlu0 %134, %v126
    %v136 = vpop.permute.xlu0 %135
    %v137 = vperm.slane %v133, %v97
    %v138 = vperm.slane %v136, %v97
    %v139 = vsel %vm100, %v138, %v137
    %v141 = vsel %vm103, %v139, 0.0
    %142 = vadd.xlane.f32.xlu0 %v141
    %v143 = vpop.xlane.xlu0 %142
    %v144 = vadd.f32 %v128, %v143
    %vm145 = vcmask 1024
    %146 = vst.msk [vmem:[#allocation4] sm:$0x3] %vm145, %v144
    %v147 = vld [vmem:[#allocation5] sm:$0x3]
    %149 = vset.pattern.permute.xlu0 0
    %150 = vperm.xlu0 %149, %v112
    %v151 = vpop.permute.xlu0 %150
    %v153 = vmul.f32 %v151, %v147
    %vm154 = vcmask 64512
    %v155 = vsel %vm154, %v137, 0
    %157 = vmatpush.msra.mxu0 0.0
    %158 = vmatpush.msra.mxu0 0.0
    %159 = vmatpush.msra.mxu0 0.0
    %160 = vmatpush.msra.mxu0 0.0
    %161 = vmatpush.msra.mxu0 0.0
    %162 = vmatpush.msra.mxu0 0.0
    %163 = vmatpush.msra.mxu0 0.0
    %164 = vmatpush.msra.mxu0 0.0
    %165 = vmatpush.msra.mxu0 0.0
    %166 = vmatpush.msra.mxu0 0.0
    %167 = vmatpush.msra.mxu0 0.0
    %168 = vmatpush.msra.mxu0 0.0
    %169 = vmatpush.msra.mxu0 0.0
    %170 = vmatpush.msra.mxu0 0.0
    %171 = vmatpush.msra.mxu0 0.0
    %172 = vmatpush.msra.mxu0 %v70
    %173 = vmatmul.f32.gmra.mxu0 %v155
    %v174 = vpop.f32.mrf.mxu0
    %v175 = vadd.f32 0.0, %v174
    %176 = vdwg.mxu0
    %v177 = vsel %vm154, %v138, 0
    %179 = vmatpush.msra.mxu0 0.0
    %180 = vmatpush.msra.mxu0 0.0
    %181 = vmatpush.msra.mxu0 0.0
    %182 = vmatpush.msra.mxu0 0.0
    %183 = vmatpush.msra.mxu0 0.0
    %184 = vmatpush.msra.mxu0 0.0
    %185 = vmatpush.msra.mxu0 0.0
    %186 = vmatpush.msra.mxu0 0.0
    %187 = vmatpush.msra.mxu0 0.0
    %188 = vmatpush.msra.mxu0 0.0
    %189 = vmatpush.msra.mxu0 0.0
    %190 = vmatpush.msra.mxu0 0.0
    %191 = vmatpush.msra.mxu0 0.0
    %192 = vmatpush.msra.mxu0 0.0
    %193 = vmatpush.msra.mxu0 0.0
    %194 = vmatpush.msra.mxu0 %v71
    %195 = vmatmul.f32.gmra.mxu0 %v177
    %v196 = vpop.f32.mrf.mxu0
    %v197 = vadd.f32 0.0, %v196
    %198 = vdwg.mxu0
    %v201 = vrot.slane %v197, 7
    %v202 = vsel %vm100, %v201, %v175
    %v204 = vadd.f32 %v153, %v202
    %vm205 = vcmask 254976
    %206 = vst.msk [vmem:[#allocation5] sm:$0x3] %vm205, %v204
    %207 = vst.msk [vmem:[#allocation3] sm:$0x3] %vm145, %v109
    // Predicated region
    $region30: #{tpu_custom_call.1} parent=1 // pred_check
      %p208 = pneg %p27
    $region31: #{tpu_custom_call.1} parent=1 // pred_check_branch
      %210 = sbr.rel (%p208) target = $region33
    $region32: #{tpu_custom_call.1} parent=1 // pred_region
      %v211 = vld [vmem:[%s0] sm:$0x3]
      %v212 = vld [vmem:[#allocation4] sm:$0x3]
      %v213 = vrcp.pop %v212
      %v214 = vmul.f32 %v212, %v213
      %v215 = vsub.f32 1.0, %v214
      %v216 = vmul.f32 %v213, %v215
      %v217 = vadd.f32 %v213, %v216
      %vm218 = vweird.f32 %v212
      %vm219 = vweird.f32 %v213
      %vm220 = vmor %vm218, %vm219
      %v221 = vsel %vm220, %v213, %v217
      %v222 = vand.u32 2147483647, %v212
      %vm223 = vcmp.eq.f32.partialorder %v222, 8.507059e+37
      %v224 = vand.u32 %v212, 2147483648
      %v225 = vor.u32 1.1754944e-38, %v224
      %v226 = vsel %vm223, %v225, %v221
      %v227 = vmul.f32 1.0, %v226
      %v228 = vld [vmem:[#allocation3] sm:$0x3]
      %v229 = vld [vmem:[#allocation6] sm:$0x3]
      %231 = vset.pattern.permute.xlu0 0
      %232 = vperm.xlu0 %231, %v228
      %v233 = vpop.permute.xlu0 %232
      %v235 = vsub.f32 %v229, %v233
      %v236 = vmul.f32 %v235, 1.442695
      %v237 = vpow.pop %v236
      %239 = vset.pattern.permute.xlu0 0
      %240 = vperm.xlu0 %239, %v227
      %v241 = vpop.permute.xlu0 %240
      %v243 = vmul.f32 %v237, %v241
      %244 = vst.msk [vmem:[#allocation9] sm:$0x3] %vm103, %v243
      %v245 = vld [vmem:[#allocation5] sm:$0x3]
      %v246 = vmul.f32 %v245, %v241
      %v247 = vld [vmem:[%s4] sm:$0xff]
      %v248 = vld [vmem:[%s4 + $0x8] sm:$0xff]
      %v249 = vld [vmem:[%s4 + $0x10] sm:$0xff]
      %v250 = vld [vmem:[%s4 + $0x18] sm:$0xff]
      %v251 = vld [vmem:[%s4 + $0x20] sm:$0xff]
      %v252 = vld [vmem:[%s4 + $0x28] sm:$0xff]
      %v253 = vld [vmem:[%s4 + $0x30] sm:$0xff]
      %v254 = vld [vmem:[%s4 + $0x38] sm:$0xff]
      %v256 = vsel %vm78, %v211, 0
      %258 = vmatpush.msra.mxu0 0.0
      %259 = vmatpush.msra.mxu0 0.0
      %260 = vmatpush.msra.mxu0 0.0
      %261 = vmatpush.msra.mxu0 0.0
      %262 = vmatpush.msra.mxu0 0.0
      %263 = vmatpush.msra.mxu0 0.0
      %264 = vmatpush.msra.mxu0 0.0
      %265 = vmatpush.msra.mxu0 0.0
      %266 = vmatpush.msra.mxu0 0.0
      %267 = vmatpush.msra.mxu0 0.0
      %268 = vmatpush.msra.mxu0 0.0
      %269 = vmatpush.msra.mxu0 0.0
      %270 = vmatpush.msra.mxu0 %v254
      %271 = vmatpush.msra.mxu0 %v253
      %272 = vmatpush.msra.mxu0 %v252
      %273 = vmatpush.msra.mxu0 %v251
      %274 = vmatmul.f32.gmra.mxu0 %v256
      %v275 = vpop.f32.mrf.mxu0
      %v276 = vadd.f32 0.0, %v275
      %277 = vdwg.mxu0
      %v279 = vsel %vm78, %v246, 0
      %281 = vmatpush.msra.mxu0 0.0
      %282 = vmatpush.msra.mxu0 0.0
      %283 = vmatpush.msra.mxu0 0.0
      %284 = vmatpush.msra.mxu0 0.0
      %285 = vmatpush.msra.mxu0 0.0
      %286 = vmatpush.msra.mxu0 0.0
      %287 = vmatpush.msra.mxu0 0.0
      %288 = vmatpush.msra.mxu0 0.0
      %289 = vmatpush.msra.mxu0 0.0
      %290 = vmatpush.msra.mxu0 0.0
      %291 = vmatpush.msra.mxu0 0.0
      %292 = vmatpush.msra.mxu0 0.0
      %293 = vmatpush.msra.mxu0 %v250
      %294 = vmatpush.msra.mxu0 %v249
      %295 = vmatpush.msra.mxu0 %v248
      %296 = vmatpush.msra.mxu0 %v247
      %297 = vmatmul.f32.gmra.mxu0 %v279
      %v298 = vpop.f32.mrf.mxu0
      %v299 = vadd.f32 %v276, %v298
      %300 = vdwg.mxu0
      %v301 = vld [vmem:[%s5] sm:$0x1]
      %v303 = vperm.slane %v301, 0
      %v305 = vadd.f32 %v299, %v303
      %v306 = vtanh.pop %v305
      %307 = vst.msk [vmem:[#allocation7] sm:$0x3] %vm205, %v306
    $region33: #{tpu_custom_call.1} parent=1 // pred_fallthru
      _
    // Predicated region
    $region34: #{tpu_custom_call.1} parent=1 // pred_check
      _
    $region35: #{tpu_custom_call.1} parent=1 // pred_check_branch
      %309 = sbr.rel (0) target = $region37
    $region36: #{tpu_custom_call.1} parent=1 // pred_region
      %311 = vsyncadd [#allocation8], 0
      %s313 = sshll.u32 [#allocation7], 4
      %s314 = int_to_ptr.vmem [resolvable:$true] %s313
      %s315 = sshll.u32 %s6, 4
      %s316 = int_to_ptr.hbm [resolvable:$true] %s315
      %318 = dma.vmem_to_hbm [thread:$0]  %s314, 32, %s316, [#allocation8]
    $region37: #{tpu_custom_call.1} parent=1 // pred_fallthru
      _
    // Predicated region
    $region38: #{tpu_custom_call.1} parent=1 // pred_check
      _
    $region39: #{tpu_custom_call.1} parent=1 // pred_check_branch
      %320 = sbr.rel (0) target = $region41
    $region40: #{tpu_custom_call.1} parent=1 // pred_region
      %322 = vsyncadd [#allocation10], 0
      %s324 = sshll.u32 [#allocation9], 4
      %s325 = int_to_ptr.vmem [resolvable:$true] %s324
      %s326 = sshll.u32 %s7, 4
      %s327 = int_to_ptr.hbm [resolvable:$true] %s326
      %329 = dma.vmem_to_hbm [thread:$0]  %s325, 32, %s327, [#allocation10]
    $region41: #{tpu_custom_call.1} parent=1 // pred_fallthru
      _
    // Predicated region
    $region42: #{tpu_custom_call.1} parent=1 // pred_check
      _
    $region43: #{tpu_custom_call.1} parent=1 // pred_check_branch
      %331 = sbr.rel (0) target = $region45
    $region44: #{tpu_custom_call.1} parent=1 // pred_region
      %333 = dma.done [#allocation8], 32
    $region45: #{tpu_custom_call.1} parent=1 // pred_fallthru
      _
    // Predicated region
    $region46: #{tpu_custom_call.1} parent=1 // pred_check
      _
    $region47: #{tpu_custom_call.1} parent=1 // pred_check_branch
      %335 = sbr.rel (0) target = $region49
    $region48: #{tpu_custom_call.1} parent=1 // pred_region
      %337 = dma.done [#allocation10], 32
    $region49: #{tpu_custom_call.1} parent=1 // pred_fallthru
      _
    %338 = vsyncpa [#allocation8], 1
    %339 = vsyncpa [#allocation10], 1

</llo_original>
